<compile_context>
chip_gen: v5e
topology: v5e:2x2
jax: 0.10.0
libtpu: 0.0.40
codegen_flags: <defaults>
</compile_context>

<pallas_src>
import jax
import jax.numpy as jnp
from jax.experimental import pallas as pl
from jax.experimental.pallas import tpu as pltpu

_LANE = 128
_MAX_TILE_COLS = 32768            # hard cap on lane tile; multiple of 128
_VMEM_BUDGET_PER_BUF = 4 << 20    # ~4 MiB/input buffer (Pallas double-buffers)
_TARGET_GRID_STEPS = 8            # >=4-8 steps: pipelining + v7x dual-TC


def _pick_tile(rows, bytes_per_col):
    """Lane-tile: multiple of 128, aims for >=_TARGET_GRID_STEPS grid steps,
    respects the VMEM budget, and (when possible) divides `rows` exactly so no
    pad copy is ever needed."""
    vmem_cap = max(_LANE, (_VMEM_BUDGET_PER_BUF // max(1, bytes_per_col))
                  // _LANE * _LANE)
    cap = min(_MAX_TILE_COLS, vmem_cap)
    tile = pl.cdiv(rows, _TARGET_GRID_STEPS)
    tile = pl.cdiv(tile, _LANE) * _LANE
    tile = max(_LANE, min(tile, cap))
    if rows % _LANE == 0:
        # bounded downward search for an exact divisor (avoids any jnp.pad pass)
        t = tile
        while t > _LANE and t > tile // 2 and rows % t != 0:
            t -= _LANE
        if rows % t == 0:
            tile = t
    return tile


def _nls0_tile(x):
    """x: (C, T) logits -- classes on sublanes, anchors on lanes.
    Returns (1, T) f32: -log_softmax(x)[0, :] = logsumexp(x, axis=0) - x[0, :]."""
    x = x.astype(jnp.float32)
    m = jnp.max(x, axis=0, keepdims=True)                              # (1, T)
    lse = jnp.log(jnp.sum(jnp.exp(x - m), axis=0, keepdims=True)) + m  # (1, T)
    return lse - x[0:1, :]


def _nls0_kernel_2d(xt_ref, o_ref):
    # xt_ref: (C, T) block, o_ref: (1, T) block
    o_ref[...] = _nls0_tile(xt_ref[...])


def _nls0_kernel_3d(xt_ref, o_ref):
    # xt_ref: (1, C, T) block (one batch), o_ref: (1, 1, T) block
    o_ref[0] = _nls0_tile(xt_ref[0])


def _neg_log_softmax0_cmajor_2d(xt):
    """xt: (C, rows) class-major logits. Returns (rows,) f32 of -log_softmax[0]."""
    C, rows = xt.shape
    itemsize = jnp.dtype(xt.dtype).itemsize
    tile = _pick_tile(rows, C * itemsize)
    rows_p = pl.cdiv(rows, tile) * tile
    if rows_p != rows:
        # TODO(synk): rare fallback (anchor count not a 128-multiple); costs one
        # extra HBM pass. Real anchor counts (B*H*W) never hit this branch.
        xt = jnp.pad(xt, ((0, 0), (0, rows_p - rows)))
    grid_steps = rows_p // tile
    cost = pl.CostEstimate(
        flops=3 * C * rows_p,
        transcendentals=(C + 1) * rows_p,
        bytes_accessed=C * rows_p * itemsize + rows_p * 4,
    )
    out = pl.pallas_call(
        _nls0_kernel_2d,
        out_shape=jax.ShapeDtypeStruct((1, rows_p), jnp.float32),
        grid=(grid_steps,),
        in_specs=[pl.BlockSpec((C, tile), lambda i: (0, i))],
        out_specs=pl.BlockSpec((1, tile), lambda i: (0, i)),
        compiler_params=pltpu.CompilerParams(
            dimension_semantics=("parallel",)),
        cost_estimate=cost,
    )(xt)
    return out[0, :rows]


def multibox_cls_loss_class_major(cls_map_cmajor):
    """Preferred fast path: cls_map in channel-major (B, C, N) layout, exactly as
    a conv head emits it (before any NCHW->NHWC permute).  No wrapper transpose,
    no up-cast; a single streaming read of the logits.  Returns (B, N) f32."""
    B, C, N = cls_map_cmajor.shape
    itemsize = jnp.dtype(cls_map_cmajor.dtype).itemsize
    tile = _pick_tile(N, C * itemsize)
    n_p = pl.cdiv(N, tile) * tile
    x = cls_map_cmajor
    if n_p != N:
        # TODO(synk): rare ragged fallback (see _neg_log_softmax0_cmajor_2d).
        x = jnp.pad(x, ((0, 0), (0, 0), (0, n_p - N)))
    cost = pl.CostEstimate(
        flops=3 * B * C * n_p,
        transcendentals=(C + 1) * B * n_p,
        bytes_accessed=B * C * n_p * itemsize + B * n_p * 4,
    )
    out = pl.pallas_call(
        _nls0_kernel_3d,
        out_shape=jax.ShapeDtypeStruct((B, 1, n_p), jnp.float32),
        grid=(B, n_p // tile),
        in_specs=[pl.BlockSpec((1, C, tile), lambda b, i: (b, 0, i))],
        out_specs=pl.BlockSpec((1, 1, tile), lambda b, i: (b, 0, i)),
        compiler_params=pltpu.CompilerParams(
            dimension_semantics=("parallel", "parallel")),
        cost_estimate=cost,
    )(x)
    return out[:, 0, :N]


def multibox_loss_forward(model_out, label, *, neg_pos_ratio=3):
    """JAX/Pallas equivalent of MultiBoxLoss.forward (visible portion):
        loss[b, n] = -log_softmax(cls_map, axis=2)[b, n, 0]
    """
    score_map, geo_map, cls_map = model_out
    del score_map, geo_map, label, neg_pos_ratio  # unused in the visible compute
    B, N, C = cls_map.shape
    # The spec hands anchors-major (B, N, C); one transpose (pure layout
    # plumbing, no up-cast) is unavoidable here to keep the kernel lane-dense.
    # Real models should feed the channel-major conv output straight to
    # multibox_cls_loss_class_major and skip this copy entirely.
    xt = jnp.transpose(cls_map.reshape(B * N, C))   # (C, B*N)
    loss = _neg_log_softmax0_cmajor_2d(xt)          # (B*N,) float32
    return loss.reshape(B, N)


if __name__ == "__main__":
    key = jax.random.PRNGKey(0)
    k1, k2, k3, k4 = jax.random.split(key, 4)

    B, H, W = 2, 16, 16
    N = H * W           # 256 anchors per image
    C = 8               # num_classes

    score_map = jax.random.normal(k1, (B, 1, H, W), dtype=jnp.float32)   # NCHW
    geo_map   = jax.random.normal(k2, (B, 8, H, W), dtype=jnp.float32)   # NCHW
    cls_map   = jax.random.normal(k3, (B, N, C),   dtype=jnp.float32)
    label     = jax.random.randint(k4, (B, N), 0, C).astype(jnp.int32)

    # Spec-shaped forward (B, N, C)
    loss = multibox_loss_forward((score_map, geo_map, cls_map), label)
    loss = jax.block_until_ready(loss)

    ref = -jax.nn.log_softmax(cls_map, axis=2)[:, :, 0]
    assert loss.shape == (B, N)
    assert loss.dtype == jnp.float32
    assert jnp.allclose(loss, ref, atol=1e-5, rtol=1e-5), "mismatch vs reference"

    # Channel-major fast path (B, C, N) -- no wrapper transpose before the kernel.
    cls_cmajor = jnp.transpose(cls_map, (0, 2, 1))   # test-side construction only
    loss_cm = jax.block_until_ready(multibox_cls_loss_class_major(cls_cmajor))
    assert loss_cm.shape == (B, N)
    assert jnp.allclose(loss_cm, ref, atol=1e-5, rtol=1e-5), "class-major mismatch"

    print("KERNEL_OK")
</pallas_src>

<mosaic_0001>
module attributes {stable_mosaic.version = 11 : i64} {
  func.func @_nls0_kernel_2d(%arg0: i32, %arg1: memref<8x128xf32, #tpu.memory_space<vmem>>, %arg2: memref<1x128xf32, #tpu.memory_space<vmem>>) attributes {dimension_semantics = [#tpu.dimension_semantics<parallel>], iteration_bounds = array<i64: 4>, scalar_prefetch = 0 : i64, scratch_operands = 0 : i64, tpu.core_type = #tpu.core_type<tc>, window_params = [{transform_indices = @transform_0, window_bounds = array<i64: 8, 128>}, {transform_indices = @transform_1, window_bounds = array<i64: 1, 128>}]} {
    %c0 = arith.constant 0 : index
    %c0_0 = arith.constant 0 : index
    %0 = vector.load %arg1[%c0, %c0_0] : memref<8x128xf32, #tpu.memory_space<vmem>>, vector<8x128xf32>
    %cst = arith.constant dense<0xFF800000> : vector<128xf32>
    %1 = vector.multi_reduction <maximumf>, %0, %cst [0] : vector<8x128xf32> to vector<128xf32>
    %2 = vector.shape_cast %1 : vector<128xf32> to vector<1x128xf32>
    %3 = vector.broadcast %2 : vector<1x128xf32> to vector<8x128xf32>
    %4 = arith.subf %0, %3 : vector<8x128xf32>
    %5 = math.exp %4 : vector<8x128xf32>
    %cst_1 = arith.constant dense<0.000000e+00> : vector<128xf32>
    %6 = vector.multi_reduction <add>, %5, %cst_1 [0] : vector<8x128xf32> to vector<128xf32>
    %7 = vector.shape_cast %6 : vector<128xf32> to vector<1x128xf32>
    %8 = math.log %7 : vector<1x128xf32>
    %9 = arith.addf %8, %2 : vector<1x128xf32>
    %10 = vector.extract_strided_slice %0 {offsets = [0, 0], sizes = [1, 128], strides = [1, 1]} : vector<8x128xf32> to vector<1x128xf32>
    %11 = arith.subf %9, %10 : vector<1x128xf32>
    %c0_2 = arith.constant 0 : index
    %c0_3 = arith.constant 0 : index
    %12 = vector.load %arg2[%c0_2, %c0_3] : memref<1x128xf32, #tpu.memory_space<vmem>>, vector<1x128xf32>
    tpu.vector_store %arg2[%c0_2, %c0_3], %11 {strides = array<i32>} : memref<1x128xf32, #tpu.memory_space<vmem>>, vector<1x128xf32>,
    return
  }
  func.func @transform_0(%arg0: i32) -> (i32, i32) {
    %c0_i32 = arith.constant 0 : i32
    %c0_i32_0 = arith.constant 0 : i32
    return %c0_i32, %arg0 : i32, i32
  }
  func.func @transform_1(%arg0: i32) -> (i32, i32) {
    %c0_i32 = arith.constant 0 : i32
    %c0_i32_0 = arith.constant 0 : i32
    return %c0_i32, %arg0 : i32, i32
  }
}

</mosaic_0001>

<llo_original>
// kernel: tpu_custom_call.1
$region0: #{tpu_custom_call.1}
  #allocation0 [shape = 'u32[]', space=smem, size = 0x4, offset = 0x4, fixed_abs, tag = 'smem constant byte address 0x4 - core index']
  #allocation1 [shape = 'u32[72,128]{1,0:T(1,128)}', space=vmem, size = 0x9000, scoped, tag = 'internal scratch']
  %s0 = inlined_call_operand.hbm [shape: f32[8,512], index: 0, kind: input, shape index: {}]
  %s1 = inlined_call_operand.hbm [shape: f32[1,512], index: 1, kind: output, shape index: {}]
  %s2 = sld [smem:[#allocation0]]
  $region41: #{tpu_custom_call.1} parent=0
    _
  %s4 = ssub.s32 1, %s2
  %s5 = scalar_select 0, %s4, %s2
  $region1: #{tpu_custom_call.1} parent=0
    #allocation2 [shape = 'u8[8192]{0}', space=vmem, size = 0x2000, scoped, tag = 'input window, operand 0']
    #allocation3 [shape = 's32[2]{0}', space=sflag, size = 0x8, scoped, tag = 'scoped memory for tpu_custom_call.1']
    #allocation4 [shape = 's32[2]{0}', space=sflag, size = 0x8, scoped, tag = 'scoped memory for tpu_custom_call.1']
    #allocation5 [shape = 'u8[1024]{0}', space=vmem, size = 0x400, scoped, tag = 'output window, operand 0']
    %6 = vsyncpa [#allocation3], 0
    %s7 = scalar_lea.sflag [#allocation3], 1
    %8 = vsyncpa %s7, 0
    %9 = vsyncpa [#allocation4], 0
    %s10 = scalar_lea.sflag [#allocation4], 1
    %11 = vsyncpa %s10, 0
    loop: start=0, step=1, limit=6
    $region2: #{tpu_custom_call.1} parent=1 // loop_pre_header
      _
    $region3: #{tpu_custom_call.1} parent=1 // loop_header
      %s13 = sphi 0, %s17
      %p14 = scmp.ge.s32.totalorder %s13, 6
      %s23 = sphi 0, %s25
      %s26 = sphi 0, %s23
      %s27 = sphi 0, %s26
      %s43 = sphi 0, %s27
      %s49 = sphi 0, %s51
      %s52 = sphi 0, %s49
      %s53 = sphi 0, %s52
      %s69 = sphi 0, %s53
    $region4: #{tpu_custom_call.1} parent=1 // loop_header_branch
      %16 = sbr.rel (%p14) target = $region8
    $region5: #{tpu_custom_call.1} parent=1 // loop_body
      %s18 = ssub.s32 %s13, 1
      %s19 = ssub.s32 %s13, 2
      %s20 = sadd.s32 %s13, 1
      %s21 = ssub.s32 %s13, %s20
      %p22 = scmp.eq.s32.totalorder %s21, 0
      %s24 = sadd.s32 %s23, 1
      %s25 = scalar_select %p22, %s23, %s24
      %p28 = pneg %p22
      %p29 = scmp.eq.s32.totalorder %s13, 3
      %p30 = por %p28, %p29
      %p31 = scmp.ne.s32.totalorder %s23, %s26
      %p32 = scmp.eq.s32.totalorder %s13, 0
      %p33 = por %p31, %p32
      %p34 = scmp.ne.s32.totalorder %s23, %s26
      %p35 = scmp.eq.s32.totalorder %s18, 3
      %p36 = por %p34, %p35
      %p37 = scmp.ne.s32.totalorder %s26, %s27
      %p38 = scmp.eq.s32.totalorder %s18, 0
      %p39 = por %p37, %p38
      %p40 = scmp.ne.s32.totalorder %s26, %s27
      %p41 = scmp.eq.s32.totalorder %s19, 3
      %p42 = por %p40, %p41
      %p44 = scmp.ne.s32.totalorder %s27, %s43
      %p45 = scmp.eq.s32.totalorder %s19, 0
      %p46 = por %p44, %p45
      %s47 = ssub.s32 %s13, %s20
      %p48 = scmp.eq.s32.totalorder %s47, 0
      %s50 = sadd.s32 %s49, 1
      %s51 = scalar_select %p48, %s49, %s50
      %p54 = pneg %p48
      %p55 = scmp.eq.s32.totalorder %s13, 3
      %p56 = por %p54, %p55
      %p57 = scmp.ne.s32.totalorder %s49, %s52
      %p58 = scmp.eq.s32.totalorder %s13, 0
      %p59 = por %p57, %p58
      %p60 = scmp.ne.s32.totalorder %s49, %s52
      %p61 = scmp.eq.s32.totalorder %s18, 3
      %p62 = por %p60, %p61
      %p63 = scmp.ne.s32.totalorder %s52, %s53
      %p64 = scmp.eq.s32.totalorder %s18, 0
      %p65 = por %p63, %p64
      %p66 = scmp.ne.s32.totalorder %s52, %s53
      %p67 = scmp.eq.s32.totalorder %s19, 3
      %p68 = por %p66, %p67
      %p70 = scmp.ne.s32.totalorder %s53, %s69
      %p71 = scmp.eq.s32.totalorder %s19, 0
      %p72 = por %p70, %p71
      %p73 = scmp.le.s32.totalorder 1, %s13
      %p74 = scmp.lt.s32.totalorder %s13, 5
      %p75 = pnand %p73, %p74
      %p76 = pneg %p75
      // Predicated region
      $region9: #{tpu_custom_call.1} parent=5 // pred_check
        _
      $region10: #{tpu_custom_call.1} parent=5 // pred_check_branch
        %78 = sbr.rel (%p75) target = $region12
      $region11: #{tpu_custom_call.1} parent=5 // pred_region
        %s79 = ssub.s32 %s13, 1
      $region12: #{tpu_custom_call.1} parent=5 // pred_fallthru
        _
      %p80 = scmp.lt.s32.totalorder %s13, 4
      // Predicated region
      $region13: #{tpu_custom_call.1} parent=5 // pred_check
        %p81 = pneg %p80
      $region14: #{tpu_custom_call.1} parent=5 // pred_check_branch
        %83 = sbr.rel (%p81) target = $region16
      $region15: #{tpu_custom_call.1} parent=5 // pred_region
        // Predicated region
        $region17: #{tpu_custom_call.1} parent=15 // pred_check
          %p84 = pneg %p33
        $region18: #{tpu_custom_call.1} parent=15 // pred_check_branch
          %86 = sbr.rel (%p84) target = $region20
        $region19: #{tpu_custom_call.1} parent=15 // pred_region
          %s87 = sand.u32 %s23, 1
          %s88 = scalar_lea.sflag [#allocation3], %s87
          %s89 = sand.u32 %s23, 1
          %s90 = smul.addr %s89, 8
          %s91 = scalar_lea.vmem [#allocation2], %s90
          %93 = vsyncadd %s88, 0
          %s94 = smul.addr %s13, 8
          %s95 = scalar_lea.hbm %s0, %s94
          %s97 = sshll.u32 %s95, 4
          %s98 = int_to_ptr.hbm [resolvable:$true] %s97
          %s99 = sshll.u32 %s91, 4
          %s100 = int_to_ptr.vmem [resolvable:$true] %s99
          %102 = dma.hbm_to_vmem [thread:$0]  %s98, 128, %s100, %s88
        $region20: #{tpu_custom_call.1} parent=15 // pred_fallthru
          _
      $region16: #{tpu_custom_call.1} parent=5 // pred_fallthru
        _
      %p103 = scmp.le.s32.totalorder 1, %s13
      %p104 = scmp.lt.s32.totalorder %s13, 5
      %p105 = pnand %p103, %p104
      %p106 = pneg %p105
      // Predicated region
      $region21: #{tpu_custom_call.1} parent=5 // pred_check
        _
      $region22: #{tpu_custom_call.1} parent=5 // pred_check_branch
        %108 = sbr.rel (%p105) target = $region24
      $region23: #{tpu_custom_call.1} parent=5 // pred_region
        %s109 = ssub.s32 %s13, 1
        %s110 = sand.u32 %s26, 1
        %s111 = scalar_lea.sflag [#allocation3], %s110
        %s112 = sand.u32 %s26, 1
        %s113 = smul.addr %s112, 8
        %s114 = scalar_lea.vmem [#allocation2], %s113
        // Predicated region
        $region25: #{tpu_custom_call.1} parent=23 // pred_check
          %p115 = pneg %p39
        $region26: #{tpu_custom_call.1} parent=23 // pred_check_branch
          %117 = sbr.rel (%p115) target = $region28
        $region27: #{tpu_custom_call.1} parent=23 // pred_region
          %119 = dma.done %s111, 128
        $region28: #{tpu_custom_call.1} parent=23 // pred_fallthru
          _
        %s120 = sand.u32 %s26, 1
        %s121 = scalar_lea.sflag [#allocation3], %s120
        %s122 = sand.u32 %s26, 1
        %s123 = smul.addr %s122, 8
        %s124 = scalar_lea.vmem [#allocation2], %s123
        %p125 = pneg %p39
        %p126 = pneg %p36
        %p127 = pneg %p65
        %p128 = pneg %p62
        %s129 = sand.u32 %s52, 1
        %s130 = scalar_lea.sflag [#allocation4], %s129
        %s131 = sand.u32 %s52, 1
        %s132 = scalar_lea.vmem [#allocation5], %s131
        %v133 = vld [vmem:[%s114] sm:$0xff]
        %v134 = vrot.slane %v133, 4
        %v135 = vmax.f32 %v133, %v134
        %v136 = vrot.slane %v135, 2
        %v137 = vmax.f32 %v135, %v136
        %v138 = vrot.slane %v137, 1
        %v139 = vmax.f32 %v137, %v138
        %v140 = vsub.f32 %v133, %v139
        %v141 = vmul.f32 %v140, 1.442695
        %v142 = vpow.pop %v141
        %v143 = vrot.slane %v142, 4
        %v144 = vadd.f32 %v142, %v143
        %v145 = vrot.slane %v144, 2
        %v146 = vadd.f32 %v144, %v145
        %v147 = vrot.slane %v146, 1
        %v148 = vadd.f32 %v146, %v147
        %v149 = vlog2.pop %v148
        %v150 = vmul.f32 %v149, 0.6931472
        %v151 = vadd.f32 %v150, %v139
        %v152 = vsub.f32 %v151, %v133
        %153 = vst [vmem:[%s132] sm:$0x1] %v152
        %s154 = sand.u32 %s52, 1
        %s155 = scalar_lea.sflag [#allocation4], %s154
        %s156 = sand.u32 %s52, 1
        %s157 = scalar_lea.vmem [#allocation5], %s156
        // Predicated region
        $region29: #{tpu_custom_call.1} parent=23 // pred_check
          %p158 = pneg %p62
        $region30: #{tpu_custom_call.1} parent=23 // pred_check_branch
          %160 = sbr.rel (%p158) target = $region32
        $region31: #{tpu_custom_call.1} parent=23 // pred_region
          %162 = vsyncadd %s155, 0
          %s163 = scalar_lea.hbm %s1, %s18
          %s165 = sshll.u32 %s157, 4
          %s166 = int_to_ptr.vmem [resolvable:$true] %s165
          %s167 = sshll.u32 %s163, 4
          %s168 = int_to_ptr.hbm [resolvable:$true] %s167
          %170 = dma.vmem_to_hbm [thread:$0]  %s166, 16, %s168, %s155
        $region32: #{tpu_custom_call.1} parent=23 // pred_fallthru
          _
      $region24: #{tpu_custom_call.1} parent=5 // pred_fallthru
        _
      %p171 = scmp.le.s32.totalorder 2, %s13
      // Predicated region
      $region33: #{tpu_custom_call.1} parent=5 // pred_check
        %p172 = pneg %p171
      $region34: #{tpu_custom_call.1} parent=5 // pred_check_branch
        %174 = sbr.rel (%p172) target = $region36
      $region35: #{tpu_custom_call.1} parent=5 // pred_region
        %s175 = ssub.s32 %s13, 2
        // Predicated region
        $region37: #{tpu_custom_call.1} parent=35 // pred_check
          %p176 = pneg %p68
        $region38: #{tpu_custom_call.1} parent=35 // pred_check_branch
          %178 = sbr.rel (%p176) target = $region40
        $region39: #{tpu_custom_call.1} parent=35 // pred_region
          %s179 = sand.u32 %s53, 1
          %s180 = scalar_lea.sflag [#allocation4], %s179
          %s181 = sand.u32 %s53, 1
          %s182 = scalar_lea.vmem [#allocation5], %s181
          %184 = dma.done %s180, 16
        $region40: #{tpu_custom_call.1} parent=35 // pred_fallthru
          _
      $region36: #{tpu_custom_call.1} parent=5 // pred_fallthru
        _
    $region6: #{tpu_custom_call.1} parent=1 // loop_footer
      %s17 = sadd.s32 1, %s13
    $region7: #{tpu_custom_call.1} parent=1 // loop_footer_branch
      %12 = sbr.rel target = $region3
    $region8: #{tpu_custom_call.1} parent=1 // loop_exit
      _
    %185 = vsyncpa [#allocation3], 1
    %s186 = scalar_lea.sflag [#allocation3], 1
    %187 = vsyncpa %s186, 1
    %188 = vsyncpa [#allocation4], 1
    %s189 = scalar_lea.sflag [#allocation4], 1
    %190 = vsyncpa %s189, 1

</llo_original>
